<compile_context>
chip_gen: v7x
topology: tpu7x:2x2x1
jax: 0.10.0
libtpu: 0.0.40
codegen_flags: <defaults>
</compile_context>

<pallas_src>
import jax
import jax.numpy as jnp
from jax import lax
from jax.experimental import pallas as pl
from jax.experimental.pallas import tpu as pltpu

NEG_SLOPE = 0.01  # torch.nn.LeakyReLU default
HIDDEN = 32


def _leaky_relu(v):
    return jnp.where(v >= 0, v, NEG_SLOPE * v)


def neuralnet_kernel(x_ref, w1_ref, b1_ref, w2_ref, b2_ref, w3_ref, b3_ref, o_ref):
    x = x_ref[...].astype(jnp.float32)          # (TB, in_size)
    n = x.shape[1]

    # Row-wise standardization: mean / unbiased std (ddof=1) over feature dim.
    mean = jnp.mean(x, axis=1, keepdims=True)
    centered = x - mean
    var = jnp.sum(centered * centered, axis=1, keepdims=True) * (1.0 / (n - 1))
    inv_std = lax.rsqrt(var)                    # EUP rsqrt; multiply co-issues on VPU
    xn = centered * inv_std

    # Linear(in_size, 32) + LeakyReLU
    h1 = jnp.dot(xn, w1_ref[...], preferred_element_type=jnp.float32) + b1_ref[...]
    h1 = _leaky_relu(h1)

    # Linear(32, 32) + LeakyReLU
    h2 = jnp.dot(h1, w2_ref[...], preferred_element_type=jnp.float32) + b2_ref[...]
    h2 = _leaky_relu(h2)

    # Linear(32, out_size) + LeakyReLU
    h3 = jnp.dot(h2, w3_ref[...], preferred_element_type=jnp.float32) + b3_ref[...]
    o_ref[...] = _leaky_relu(h3).astype(o_ref.dtype)


def _pick_batch_tile(B, max_tile=1024):
    """Large row tile (amortizes ~0.35 us/step), multiple of 8, VMEM-safe on v7x."""
    if B <= max_tile:
        return B                      # block == full array dim: always legal
    return max_tile                   # multiple of 8; last partial block is padded


def neuralnet_forward(x, params):
    """x: (B, in_size) float32; params: dict of W1,b1,W2,b2,W3,b3."""
    B, in_size = x.shape
    out_size = params["W3"].shape[1]
    TB = _pick_batch_tile(B)
    grid = (pl.cdiv(B, TB),)

    # Advisory cost hint for XLA's scheduler.
    flops = 2 * B * (in_size * HIDDEN + HIDDEN * HIDDEN + HIDDEN * out_size) \
        + 4 * B * in_size
    weight_bytes = 4 * (in_size * HIDDEN + HIDDEN + HIDDEN * HIDDEN + HIDDEN
                        + HIDDEN * out_size + out_size)
    cost = pl.CostEstimate(
        flops=flops,
        transcendentals=B,                                   # one rsqrt per row
        bytes_accessed=4 * B * (in_size + out_size) + weight_bytes,
    )

    const_map = lambda i: (0, 0)      # weights/biases resident across grid steps

    return pl.pallas_call(
        neuralnet_kernel,
        out_shape=jax.ShapeDtypeStruct((B, out_size), jnp.float32),
        grid=grid,
        in_specs=[
            pl.BlockSpec((TB, in_size), lambda i: (i, 0)),               # x (streamed)
            pl.BlockSpec((in_size, HIDDEN), const_map),                  # W1
            pl.BlockSpec((1, HIDDEN), const_map),                        # b1
            pl.BlockSpec((HIDDEN, HIDDEN), const_map),                   # W2
            pl.BlockSpec((1, HIDDEN), const_map),                        # b2
            pl.BlockSpec((HIDDEN, out_size), const_map),                 # W3
            pl.BlockSpec((1, out_size), const_map),                      # b3
        ],
        out_specs=pl.BlockSpec((TB, out_size), lambda i: (i, 0)),
        compiler_params=pltpu.CompilerParams(
            dimension_semantics=("parallel",),     # shard batch tiles across TCs (v7x)
            vmem_limit_bytes=64 << 20,
        ),
        cost_estimate=cost,
    )(
        x,
        params["W1"], params["b1"],
        params["W2"], params["b2"],
        params["W3"], params["b3"],
    )


def init_params(key, in_size, out_size, hidden=HIDDEN):
    """Deterministic init mimicking torch.nn.Linear (uniform +/- 1/sqrt(fan_in))."""
    ks = jax.random.split(key, 6)

    def lin(kw, kb, fan_in, fan_out):
        bound = 1.0 / jnp.sqrt(fan_in)
        W = jax.random.uniform(kw, (fan_in, fan_out), jnp.float32, -bound, bound)
        b = jax.random.uniform(kb, (1, fan_out), jnp.float32, -bound, bound)
        return W, b

    W1, b1 = lin(ks[0], ks[1], in_size, hidden)
    W2, b2 = lin(ks[2], ks[3], hidden, hidden)
    W3, b3 = lin(ks[4], ks[5], hidden, out_size)
    return {"W1": W1, "b1": b1, "W2": W2, "b2": b2, "W3": W3, "b3": b3}


def reference_forward(x, p):
    n = x.shape[1]
    mean = jnp.mean(x, axis=1, keepdims=True)
    c = x - mean
    std = jnp.sqrt(jnp.sum(c * c, axis=1, keepdims=True) / (n - 1))
    xn = c / std
    h = _leaky_relu(xn @ p["W1"] + p["b1"])
    h = _leaky_relu(h @ p["W2"] + p["b2"])
    return _leaky_relu(h @ p["W3"] + p["b3"])


if __name__ == "__main__":
    key = jax.random.PRNGKey(0)
    k_x, k_p = jax.random.split(key)

    batch, in_size, out_size = 8, 64, 16
    x = jax.random.normal(k_x, (batch, in_size), jnp.float32)
    params = init_params(k_p, in_size, out_size)

    out = neuralnet_forward(x, params)
    out = jax.block_until_ready(out)

    ref = reference_forward(x, params)
    assert out.shape == (batch, out_size)
    assert jnp.allclose(out, ref, atol=1e-5, rtol=1e-5), "mismatch vs reference"

    # Exercise the tiled / multi-step-grid path too (batch > tile).
    big_b = 2560
    xb = jax.random.normal(k_x, (big_b, in_size), jnp.float32)
    out_b = jax.block_until_ready(neuralnet_forward(xb, params))
    ref_b = reference_forward(xb, params)
    assert out_b.shape == (big_b, out_size)
    assert jnp.allclose(out_b, ref_b, atol=1e-5, rtol=1e-5), "mismatch vs reference (tiled)"

    print("KERNEL_OK")
</pallas_src>

<mosaic_0001>
module attributes {stable_mosaic.version = 11 : i64} {
  func.func @neuralnet_kernel(%arg0: i32, %arg1: memref<8x64xf32, #tpu.memory_space<vmem>>, %arg2: memref<64x32xf32, #tpu.memory_space<vmem>>, %arg3: memref<1x32xf32, #tpu.memory_space<vmem>>, %arg4: memref<32x32xf32, #tpu.memory_space<vmem>>, %arg5: memref<1x32xf32, #tpu.memory_space<vmem>>, %arg6: memref<32x16xf32, #tpu.memory_space<vmem>>, %arg7: memref<1x16xf32, #tpu.memory_space<vmem>>, %arg8: memref<8x16xf32, #tpu.memory_space<vmem>>) attributes {dimension_semantics = [#tpu.dimension_semantics<parallel>], iteration_bounds = array<i64: 1>, scalar_prefetch = 0 : i64, scratch_operands = 0 : i64, tpu.core_type = #tpu.core_type<tc>, window_params = [{transform_indices = @transform_0, window_bounds = array<i64: 8, 64>}, {pipeline_mode = #tpu.pipeline_mode<synchronous>, transform_indices = @transform_1, window_bounds = array<i64: 64, 32>}, {pipeline_mode = #tpu.pipeline_mode<synchronous>, transform_indices = @transform_2, window_bounds = array<i64: 1, 32>}, {pipeline_mode = #tpu.pipeline_mode<synchronous>, transform_indices = @transform_3, window_bounds = array<i64: 32, 32>}, {pipeline_mode = #tpu.pipeline_mode<synchronous>, transform_indices = @transform_4, window_bounds = array<i64: 1, 32>}, {pipeline_mode = #tpu.pipeline_mode<synchronous>, transform_indices = @transform_5, window_bounds = array<i64: 32, 16>}, {pipeline_mode = #tpu.pipeline_mode<synchronous>, transform_indices = @transform_6, window_bounds = array<i64: 1, 16>}, {transform_indices = @transform_7, window_bounds = array<i64: 8, 16>}]} {
    %c0 = arith.constant 0 : index
    %c0_0 = arith.constant 0 : index
    %0 = vector.load %arg1[%c0, %c0_0] : memref<8x64xf32, #tpu.memory_space<vmem>>, vector<8x64xf32>
    %cst = arith.constant dense<0.000000e+00> : vector<8xf32>
    %1 = vector.multi_reduction <add>, %0, %cst [1] : vector<8x64xf32> to vector<8xf32>
    %2 = vector.shape_cast %1 : vector<8xf32> to vector<8x1xf32>
    %cst_1 = arith.constant 6.400000e+01 : f32
    %3 = vector.broadcast %cst_1 : f32 to vector<8x1xf32>
    %4 = arith.divf %2, %3 : vector<8x1xf32>
    %5 = vector.broadcast %4 : vector<8x1xf32> to vector<8x64xf32>
    %6 = arith.subf %0, %5 : vector<8x64xf32>
    %7 = arith.mulf %6, %6 : vector<8x64xf32>
    %cst_2 = arith.constant dense<0.000000e+00> : vector<8xf32>
    %8 = vector.multi_reduction <add>, %7, %cst_2 [1] : vector<8x64xf32> to vector<8xf32>
    %9 = vector.shape_cast %8 : vector<8xf32> to vector<8x1xf32>
    %cst_3 = arith.constant 0.0158730168 : f32
    %10 = vector.broadcast %cst_3 : f32 to vector<8x1xf32>
    %11 = arith.mulf %9, %10 : vector<8x1xf32>
    %12 = math.rsqrt %11 : vector<8x1xf32>
    %13 = vector.broadcast %12 : vector<8x1xf32> to vector<8x64xf32>
    %14 = arith.mulf %6, %13 : vector<8x64xf32>
    %c0_4 = arith.constant 0 : index
    %c0_5 = arith.constant 0 : index
    %15 = vector.load %arg2[%c0_4, %c0_5] : memref<64x32xf32, #tpu.memory_space<vmem>>, vector<64x32xf32>
    %cst_6 = arith.constant dense<0.000000e+00> : vector<8x32xf32>
    %16 = tpu.matmul %14, %15, %cst_6 {dimension_numbers = #tpu.dot_dimension_numbers<[1], [0], [0], [1], [0, 0, 1, 1], [], []>} : vector<8x64xf32>, vector<64x32xf32>, vector<8x32xf32> -> vector<8x32xf32>
    %c0_7 = arith.constant 0 : index
    %c0_8 = arith.constant 0 : index
    %17 = vector.load %arg3[%c0_7, %c0_8] : memref<1x32xf32, #tpu.memory_space<vmem>>, vector<1x32xf32>
    %18 = vector.broadcast %17 : vector<1x32xf32> to vector<8x32xf32>
    %19 = arith.addf %16, %18 : vector<8x32xf32>
    %cst_9 = arith.constant 0.000000e+00 : f32
    %20 = vector.broadcast %cst_9 : f32 to vector<8x32xf32>
    %21 = arith.cmpf oge, %19, %20 : vector<8x32xf32>
    %cst_10 = arith.constant 0.00999999977 : f32
    %22 = vector.broadcast %cst_10 : f32 to vector<8x32xf32>
    %23 = arith.mulf %22, %19 : vector<8x32xf32>
    %24 = arith.select %21, %19, %23 : vector<8x32xi1>, vector<8x32xf32>
    %c0_11 = arith.constant 0 : index
    %c0_12 = arith.constant 0 : index
    %25 = vector.load %arg4[%c0_11, %c0_12] : memref<32x32xf32, #tpu.memory_space<vmem>>, vector<32x32xf32>
    %cst_13 = arith.constant dense<0.000000e+00> : vector<8x32xf32>
    %26 = tpu.matmul %24, %25, %cst_13 {dimension_numbers = #tpu.dot_dimension_numbers<[1], [0], [0], [1], [0, 0, 1, 1], [], []>} : vector<8x32xf32>, vector<32x32xf32>, vector<8x32xf32> -> vector<8x32xf32>
    %c0_14 = arith.constant 0 : index
    %c0_15 = arith.constant 0 : index
    %27 = vector.load %arg5[%c0_14, %c0_15] : memref<1x32xf32, #tpu.memory_space<vmem>>, vector<1x32xf32>
    %28 = vector.broadcast %27 : vector<1x32xf32> to vector<8x32xf32>
    %29 = arith.addf %26, %28 : vector<8x32xf32>
    %cst_16 = arith.constant 0.000000e+00 : f32
    %30 = vector.broadcast %cst_16 : f32 to vector<8x32xf32>
    %31 = arith.cmpf oge, %29, %30 : vector<8x32xf32>
    %cst_17 = arith.constant 0.00999999977 : f32
    %32 = vector.broadcast %cst_17 : f32 to vector<8x32xf32>
    %33 = arith.mulf %32, %29 : vector<8x32xf32>
    %34 = arith.select %31, %29, %33 : vector<8x32xi1>, vector<8x32xf32>
    %c0_18 = arith.constant 0 : index
    %c0_19 = arith.constant 0 : index
    %35 = vector.load %arg6[%c0_18, %c0_19] : memref<32x16xf32, #tpu.memory_space<vmem>>, vector<32x16xf32>
    %cst_20 = arith.constant dense<0.000000e+00> : vector<8x16xf32>
    %36 = tpu.matmul %34, %35, %cst_20 {dimension_numbers = #tpu.dot_dimension_numbers<[1], [0], [0], [1], [0, 0, 1, 1], [], []>} : vector<8x32xf32>, vector<32x16xf32>, vector<8x16xf32> -> vector<8x16xf32>
    %c0_21 = arith.constant 0 : index
    %c0_22 = arith.constant 0 : index
    %37 = vector.load %arg7[%c0_21, %c0_22] : memref<1x16xf32, #tpu.memory_space<vmem>>, vector<1x16xf32>
    %38 = vector.broadcast %37 : vector<1x16xf32> to vector<8x16xf32>
    %39 = arith.addf %36, %38 : vector<8x16xf32>
    %cst_23 = arith.constant 0.000000e+00 : f32
    %40 = vector.broadcast %cst_23 : f32 to vector<8x16xf32>
    %41 = arith.cmpf oge, %39, %40 : vector<8x16xf32>
    %cst_24 = arith.constant 0.00999999977 : f32
    %42 = vector.broadcast %cst_24 : f32 to vector<8x16xf32>
    %43 = arith.mulf %42, %39 : vector<8x16xf32>
    %44 = arith.select %41, %39, %43 : vector<8x16xi1>, vector<8x16xf32>
    %c0_25 = arith.constant 0 : index
    %c0_26 = arith.constant 0 : index
    %45 = vector.load %arg8[%c0_25, %c0_26] : memref<8x16xf32, #tpu.memory_space<vmem>>, vector<8x16xf32>
    tpu.vector_store %arg8[%c0_25, %c0_26], %44 {strides = array<i32>} : memref<8x16xf32, #tpu.memory_space<vmem>>, vector<8x16xf32>,
    return
  }
  func.func @transform_0(%arg0: i32) -> (i32, i32) {
    %c0_i32 = arith.constant 0 : i32
    %c0_i32_0 = arith.constant 0 : i32
    return %arg0, %c0_i32 : i32, i32
  }
  func.func @transform_1(%arg0: i32) -> (i32, i32) {
    %c0_i32 = arith.constant 0 : i32
    %c0_i32_0 = arith.constant 0 : i32
    %c0_i32_1 = arith.constant 0 : i32
    return %c0_i32, %c0_i32_0 : i32, i32
  }
  func.func @transform_2(%arg0: i32) -> (i32, i32) {
    %c0_i32 = arith.constant 0 : i32
    %c0_i32_0 = arith.constant 0 : i32
    %c0_i32_1 = arith.constant 0 : i32
    return %c0_i32, %c0_i32_0 : i32, i32
  }
  func.func @transform_3(%arg0: i32) -> (i32, i32) {
    %c0_i32 = arith.constant 0 : i32
    %c0_i32_0 = arith.constant 0 : i32
    %c0_i32_1 = arith.constant 0 : i32
    return %c0_i32, %c0_i32_0 : i32, i32
  }
  func.func @transform_4(%arg0: i32) -> (i32, i32) {
    %c0_i32 = arith.constant 0 : i32
    %c0_i32_0 = arith.constant 0 : i32
    %c0_i32_1 = arith.constant 0 : i32
    return %c0_i32, %c0_i32_0 : i32, i32
  }
  func.func @transform_5(%arg0: i32) -> (i32, i32) {
    %c0_i32 = arith.constant 0 : i32
    %c0_i32_0 = arith.constant 0 : i32
    %c0_i32_1 = arith.constant 0 : i32
    return %c0_i32, %c0_i32_0 : i32, i32
  }
  func.func @transform_6(%arg0: i32) -> (i32, i32) {
    %c0_i32 = arith.constant 0 : i32
    %c0_i32_0 = arith.constant 0 : i32
    %c0_i32_1 = arith.constant 0 : i32
    return %c0_i32, %c0_i32_0 : i32, i32
  }
  func.func @transform_7(%arg0: i32) -> (i32, i32) {
    %c0_i32 = arith.constant 0 : i32
    %c0_i32_0 = arith.constant 0 : i32
    return %arg0, %c0_i32 : i32, i32
  }
}

</mosaic_0001>

<llo_original>
// kernel: tpu_custom_call.1
$region0: #{tpu_custom_call.1}
  #allocation0 [shape = 'u32[]', space=smem, size = 0x4, offset = 0x4, fixed_abs, tag = 'smem constant byte address 0x4 - core index']
  #allocation1 [shape = 'u32[144,128]{1,0:T(1,128)}', space=vmem, size = 0x12000, scoped, tag = 'internal scratch']
  %s0 = inlined_call_operand.hbm [shape: f32[8,64], index: 0, kind: input, shape index: {}]
  %s1 = inlined_call_operand.hbm [shape: f32[64,32], index: 1, kind: input, shape index: {}]
  %s2 = inlined_call_operand.hbm [shape: f32[1,32], index: 2, kind: input, shape index: {}]
  %s3 = inlined_call_operand.hbm [shape: f32[32,32], index: 3, kind: input, shape index: {}]
  %s4 = inlined_call_operand.hbm [shape: f32[1,32], index: 4, kind: input, shape index: {}]
  %s5 = inlined_call_operand.hbm [shape: f32[32,16], index: 5, kind: input, shape index: {}]
  %s6 = inlined_call_operand.hbm [shape: f32[1,16], index: 6, kind: input, shape index: {}]
  %s7 = inlined_call_operand.hbm [shape: f32[8,16], index: 7, kind: output, shape index: {}]
  %s8 = sld [smem:[#allocation0]]
  $region66: #{tpu_custom_call.1} parent=0
    _
  %s10 = ssub.s32 1, %s8
  %s11 = scalar_select 0, %s10, %s8
  $region1: #{tpu_custom_call.1} parent=0
    #allocation2 [shape = 'u8[4096]{0}', space=vmem, size = 0x1000, scoped, tag = 'input window, operand 0, single buffered']
    #allocation3 [shape = 's32[1]{0}', space=sflag, size = 0x4, scoped, tag = 'scoped memory for tpu_custom_call.1']
    #allocation4 [shape = 's32[1]{0}', space=sflag, size = 0x4, scoped, tag = 'scoped memory for tpu_custom_call.1']
    #allocation5 [shape = 'u8[32768]{0}', space=vmem, size = 0x8000, scoped, tag = 'input window, operand 1, single buffered']
    #allocation6 [shape = 's32[1]{0}', space=sflag, size = 0x4, scoped, tag = 'scoped memory for tpu_custom_call.1']
    #allocation7 [shape = 'u8[512]{0}', space=vmem, size = 0x400, scoped, tag = 'input window, operand 2, single buffered']
    #allocation8 [shape = 'u8[16384]{0}', space=vmem, size = 0x4000, scoped, tag = 'input window, operand 3, single buffered']
    #allocation9 [shape = 's32[1]{0}', space=sflag, size = 0x4, scoped, tag = 'scoped memory for tpu_custom_call.1']
    #allocation10 [shape = 'u8[512]{0}', space=vmem, size = 0x400, scoped, tag = 'input window, operand 4, single buffered']
    #allocation11 [shape = 'u8[16384]{0}', space=vmem, size = 0x4000, scoped, tag = 'input window, operand 5, single buffered']
    #allocation12 [shape = 's32[1]{0}', space=sflag, size = 0x4, scoped, tag = 'scoped memory for tpu_custom_call.1']
    #allocation13 [shape = 'u8[512]{0}', space=vmem, size = 0x400, scoped, tag = 'input window, operand 6, single buffered']
    #allocation14 [shape = 'u8[4096]{0}', space=vmem, size = 0x1000, scoped, tag = 'output window, operand 0, single buffered']
    %12 = vsyncpa [#allocation3], 0
    %13 = vsyncpa [#allocation6], 0
    %14 = vsyncpa [#allocation9], 0
    %15 = vsyncpa [#allocation12], 0
    %16 = vsyncpa [#allocation4], 0
    // Predicated region
    $region2: #{tpu_custom_call.1} parent=1 // pred_check
      _
    $region3: #{tpu_custom_call.1} parent=1 // pred_check_branch
      %18 = sbr.rel (0) target = $region5
    $region4: #{tpu_custom_call.1} parent=1 // pred_region
      %s20 = ssub.s32 128, 128
      %21 = vsyncadd [#allocation3], %s20
      %s23 = sshll.u32 [#allocation2], 4
      %s24 = int_to_ptr.vmem [resolvable:$true] %s23
      %26 = dma.hbm_to_vmem [thread:$0]  %s0, 128, %s24, [#allocation3]
    $region5: #{tpu_custom_call.1} parent=1 // pred_fallthru
      _
    // Predicated region
    $region6: #{tpu_custom_call.1} parent=1 // pred_check
      _
    $region7: #{tpu_custom_call.1} parent=1 // pred_check_branch
      %28 = sbr.rel (0) target = $region9
    $region8: #{tpu_custom_call.1} parent=1 // pred_region
      %s30 = ssub.s32 1024, 1024
      %31 = vsyncadd [#allocation6], %s30
      %s32 = sshll.u32 [#allocation5], 4
      %s33 = int_to_ptr.vmem [resolvable:$true] %s32
      %38 = dma.hbm_to_vmem [thread:$0]  %s1, 1024, %s33, [#allocation6], 128, 128, 8
    $region9: #{tpu_custom_call.1} parent=1 // pred_fallthru
      _
    // Predicated region
    $region10: #{tpu_custom_call.1} parent=1 // pred_check
      _
    $region11: #{tpu_custom_call.1} parent=1 // pred_check_branch
      %40 = sbr.rel (0) target = $region13
    $region12: #{tpu_custom_call.1} parent=1 // pred_region
      %s42 = ssub.s32 16, 16
      %43 = vsyncadd [#allocation6], %s42
      %s45 = sshll.u32 [#allocation7], 4
      %s46 = int_to_ptr.vmem [resolvable:$true] %s45
      %48 = dma.hbm_to_vmem [thread:$0]  %s2, 16, %s46, [#allocation6]
    $region13: #{tpu_custom_call.1} parent=1 // pred_fallthru
      _
    // Predicated region
    $region14: #{tpu_custom_call.1} parent=1 // pred_check
      _
    $region15: #{tpu_custom_call.1} parent=1 // pred_check_branch
      %50 = sbr.rel (0) target = $region17
    $region16: #{tpu_custom_call.1} parent=1 // pred_region
      %s52 = ssub.s32 512, 512
      %53 = vsyncadd [#allocation9], %s52
      %s54 = sshll.u32 [#allocation8], 4
      %s55 = int_to_ptr.vmem [resolvable:$true] %s54
      %60 = dma.hbm_to_vmem [thread:$0]  %s3, 512, %s55, [#allocation9], 128, 128, 8
    $region17: #{tpu_custom_call.1} parent=1 // pred_fallthru
      _
    // Predicated region
    $region18: #{tpu_custom_call.1} parent=1 // pred_check
      _
    $region19: #{tpu_custom_call.1} parent=1 // pred_check_branch
      %62 = sbr.rel (0) target = $region21
    $region20: #{tpu_custom_call.1} parent=1 // pred_region
      %s64 = ssub.s32 16, 16
      %65 = vsyncadd [#allocation9], %s64
      %s67 = sshll.u32 [#allocation10], 4
      %s68 = int_to_ptr.vmem [resolvable:$true] %s67
      %70 = dma.hbm_to_vmem [thread:$0]  %s4, 16, %s68, [#allocation9]
    $region21: #{tpu_custom_call.1} parent=1 // pred_fallthru
      _
    // Predicated region
    $region22: #{tpu_custom_call.1} parent=1 // pred_check
      _
    $region23: #{tpu_custom_call.1} parent=1 // pred_check_branch
      %72 = sbr.rel (0) target = $region25
    $region24: #{tpu_custom_call.1} parent=1 // pred_region
      %s74 = ssub.s32 512, 512
      %75 = vsyncadd [#allocation12], %s74
      %s76 = sshll.u32 [#allocation11], 4
      %s77 = int_to_ptr.vmem [resolvable:$true] %s76
      %82 = dma.hbm_to_vmem [thread:$0]  %s5, 512, %s77, [#allocation12], 128, 128, 8
    $region25: #{tpu_custom_call.1} parent=1 // pred_fallthru
      _
    // Predicated region
    $region26: #{tpu_custom_call.1} parent=1 // pred_check
      _
    $region27: #{tpu_custom_call.1} parent=1 // pred_check_branch
      %84 = sbr.rel (0) target = $region29
    $region28: #{tpu_custom_call.1} parent=1 // pred_region
      %s86 = ssub.s32 16, 16
      %87 = vsyncadd [#allocation12], %s86
      %s89 = sshll.u32 [#allocation13], 4
      %s90 = int_to_ptr.vmem [resolvable:$true] %s89
      %92 = dma.hbm_to_vmem [thread:$0]  %s6, 16, %s90, [#allocation12]
    $region29: #{tpu_custom_call.1} parent=1 // pred_fallthru
      _
    // Predicated region
    $region30: #{tpu_custom_call.1} parent=1 // pred_check
      _
    $region31: #{tpu_custom_call.1} parent=1 // pred_check_branch
      %94 = sbr.rel (0) target = $region33
    $region32: #{tpu_custom_call.1} parent=1 // pred_region
      %95 = dma.done [#allocation3], 128
    $region33: #{tpu_custom_call.1} parent=1 // pred_fallthru
      _
    // Predicated region
    $region34: #{tpu_custom_call.1} parent=1 // pred_check
      _
    $region35: #{tpu_custom_call.1} parent=1 // pred_check_branch
      %97 = sbr.rel (0) target = $region37
    $region36: #{tpu_custom_call.1} parent=1 // pred_region
      %98 = dma.done [#allocation6], 1024
    $region37: #{tpu_custom_call.1} parent=1 // pred_fallthru
      _
    // Predicated region
    $region38: #{tpu_custom_call.1} parent=1 // pred_check
      _
    $region39: #{tpu_custom_call.1} parent=1 // pred_check_branch
      %100 = sbr.rel (0) target = $region41
    $region40: #{tpu_custom_call.1} parent=1 // pred_region
      %101 = dma.done [#allocation6], 16
    $region41: #{tpu_custom_call.1} parent=1 // pred_fallthru
      _
    // Predicated region
    $region42: #{tpu_custom_call.1} parent=1 // pred_check
      _
    $region43: #{tpu_custom_call.1} parent=1 // pred_check_branch
      %103 = sbr.rel (0) target = $region45
    $region44: #{tpu_custom_call.1} parent=1 // pred_region
      %104 = dma.done [#allocation9], 512
    $region45: #{tpu_custom_call.1} parent=1 // pred_fallthru
      _
    // Predicated region
    $region46: #{tpu_custom_call.1} parent=1 // pred_check
      _
    $region47: #{tpu_custom_call.1} parent=1 // pred_check_branch
      %106 = sbr.rel (0) target = $region49
    $region48: #{tpu_custom_call.1} parent=1 // pred_region
      %107 = dma.done [#allocation9], 16
    $region49: #{tpu_custom_call.1} parent=1 // pred_fallthru
      _
    // Predicated region
    $region50: #{tpu_custom_call.1} parent=1 // pred_check
      _
    $region51: #{tpu_custom_call.1} parent=1 // pred_check_branch
      %109 = sbr.rel (0) target = $region53
    $region52: #{tpu_custom_call.1} parent=1 // pred_region
      %110 = dma.done [#allocation12], 512
    $region53: #{tpu_custom_call.1} parent=1 // pred_fallthru
      _
    // Predicated region
    $region54: #{tpu_custom_call.1} parent=1 // pred_check
      _
    $region55: #{tpu_custom_call.1} parent=1 // pred_check_branch
      %112 = sbr.rel (0) target = $region57
    $region56: #{tpu_custom_call.1} parent=1 // pred_region
      %113 = dma.done [#allocation12], 16
    $region57: #{tpu_custom_call.1} parent=1 // pred_fallthru
      _
    %v114 = vld [vmem:[#allocation2] sm:$0xff]
    %vm115 = vcmask 523264
    %v116 = vsel %vm115, %v114, 0.0
    %117 = vadd.xlane.f32.xlu0 %v116
    %v118 = vpop.xlane.xlu0 %117
    %v119 = vrcp.pop 64.0
    %v120 = vmul.f32 %v118, %v119
    %v121 = vsub.f32 %v114, %v120
    %v122 = vmul.f32 %v121, %v121
    %v123 = vsel %vm115, %v122, 0.0
    %124 = vadd.xlane.f32.xlu0 %v123
    %v125 = vpop.xlane.xlu0 %124
    %v126 = vmul.f32 %v125, 0.015873017
    %v127 = vrsqrt.pop %v126
    %v128 = vmul.f32 %v121, %v127
    %v129 = vld [vmem:[#allocation5] sm:$0xff]
    %v130 = vld [vmem:[#allocation5 + $0x8] sm:$0xff]
    %v131 = vld [vmem:[#allocation5 + $0x10] sm:$0xff]
    %v132 = vld [vmem:[#allocation5 + $0x18] sm:$0xff]
    %v133 = vld [vmem:[#allocation5 + $0x20] sm:$0xff]
    %v134 = vld [vmem:[#allocation5 + $0x28] sm:$0xff]
    %v135 = vld [vmem:[#allocation5 + $0x30] sm:$0xff]
    %v136 = vld [vmem:[#allocation5 + $0x38] sm:$0xff]
    %v137 = vld [vmem:[#allocation7] sm:$0x1]
    %v139 = vlaneseq
    %v140 = vshrl.u32 %v139, 7
    %v141 = vsub.s32 0, %v140
    %v142 = vrot.slane %v137, %v141
    %v145 = vsel %vm115, %v128, 0
    %147 = vmatprep.subr.mxu0 0.0
    %148 = vmatpush1.msra.mxu0 %v129
    %149 = vmatprep.subr.mxu0 0.0
    %150 = vmatpush1.msra.mxu0 %v130
    %151 = vmatprep.subr.mxu0 0.0
    %152 = vmatpush1.msra.mxu0 %v131
    %153 = vmatprep.subr.mxu0 0.0
    %154 = vmatpush1.msra.mxu0 %v132
    %155 = vmatprep.subr.mxu0 0.0
    %156 = vmatpush1.msra.mxu0 %v133
    %157 = vmatprep.subr.mxu0 0.0
    %158 = vmatpush1.msra.mxu0 %v134
    %159 = vmatprep.subr.mxu0 0.0
    %160 = vmatpush1.msra.mxu0 %v135
    %161 = vmatprep.subr.mxu0 0.0
    %162 = vmatpush1.msra.mxu0 %v136
    %163 = vmatprep.subr.mxu0 0.0
    %164 = vmatpush1.msra.mxu0 0.0
    %165 = vmatprep.subr.mxu0 0.0
    %166 = vmatpush1.msra.mxu0 0.0
    %167 = vmatprep.subr.mxu0 0.0
    %168 = vmatpush1.msra.mxu0 0.0
    %169 = vmatprep.subr.mxu0 0.0
    %170 = vmatpush1.msra.mxu0 0.0
    %171 = vmatprep.subr.mxu0 0.0
    %172 = vmatpush1.msra.mxu0 0.0
    %173 = vmatprep.subr.mxu0 0.0
    %174 = vmatpush1.msra.mxu0 0.0
    %175 = vmatprep.subr.mxu0 0.0
    %176 = vmatpush1.msra.mxu0 0.0
    %177 = vmatprep.subr.mxu0 0.0
    %178 = vmatpush1.msra.mxu0 0.0
    %179 = vmatprep.subr.mxu0 0.0
    %180 = vmatpush1.msra.mxu0 0.0
    %181 = vmatprep.subr.mxu0 0.0
    %182 = vmatpush1.msra.mxu0 0.0
    %183 = vmatprep.subr.mxu0 0.0
    %184 = vmatpush1.msra.mxu0 0.0
    %185 = vmatprep.subr.mxu0 0.0
    %186 = vmatpush1.msra.mxu0 0.0
    %187 = vmatprep.subr.mxu0 0.0
    %188 = vmatpush1.msra.mxu0 0.0
    %189 = vmatprep.subr.mxu0 0.0
    %190 = vmatpush1.msra.mxu0 0.0
    %191 = vmatprep.subr.mxu0 0.0
    %192 = vmatpush1.msra.mxu0 0.0
    %193 = vmatprep.subr.mxu0 0.0
    %194 = vmatpush1.msra.mxu0 0.0
    %195 = vmatprep.subr.mxu0 0.0
    %196 = vmatpush1.msra.mxu0 0.0
    %197 = vmatprep.subr.mxu0 0.0
    %198 = vmatpush1.msra.mxu0 0.0
    %199 = vmatprep.subr.mxu0 0.0
    %200 = vmatpush1.msra.mxu0 0.0
    %201 = vmatprep.subr.mxu0 0.0
    %202 = vmatpush1.msra.mxu0 0.0
    %203 = vmatprep.subr.mxu0 0.0
    %204 = vmatpush1.msra.mxu0 0.0
    %205 = vmatprep.subr.mxu0 0.0
    %206 = vmatpush1.msra.mxu0 0.0
    %207 = vmatprep.subr.mxu0 0.0
    %208 = vmatpush1.msra.mxu0 0.0
    %209 = vmatprep.subr.mxu0 0.0
    %210 = vmatpush1.msra.mxu0 0.0
    %211 = vmatprep.mubr.f32.mxu0 0.0
    %212 = vmatmul.mubr.f32.gmra.mrb[0].mxu0 %v145
    %v213 = vpop.f32.mrb[0].mxu0
    %v214 = vadd.f32 %v142, %v213
    %v215 = vpop.f32.mrb[0].mxu0
    %216 = vdwg.mxu0
    %vm217 = vcmp.ge.f32.partialorder %v214, 0.0
    %v218 = vmul.f32 %v214, 0.01
    %v219 = vsel %vm217, %v214, %v218
    %v220 = vld [vmem:[#allocation8] sm:$0xff]
    %v221 = vld [vmem:[#allocation8 + $0x8] sm:$0xff]
    %v222 = vld [vmem:[#allocation8 + $0x10] sm:$0xff]
    %v223 = vld [vmem:[#allocation8 + $0x18] sm:$0xff]
    %v224 = vld [vmem:[#allocation10] sm:$0x1]
    %v226 = vlaneseq
    %v227 = vshrl.u32 %v226, 7
    %v228 = vsub.s32 0, %v227
    %v229 = vrot.slane %v224, %v228
    %vm231 = vcmask 261120
    %v233 = vsel %vm231, %v219, 0
    %235 = vmatprep.subr.mxu0 0.0
    %236 = vmatpush1.msra.mxu0 %v220
    %237 = vmatprep.subr.mxu0 0.0
    %238 = vmatpush1.msra.mxu0 %v221
    %239 = vmatprep.subr.mxu0 0.0
    %240 = vmatpush1.msra.mxu0 %v222
    %241 = vmatprep.subr.mxu0 0.0
    %242 = vmatpush1.msra.mxu0 %v223
    %243 = vmatprep.subr.mxu0 0.0
    %244 = vmatpush1.msra.mxu0 0.0
    %245 = vmatprep.subr.mxu0 0.0
    %246 = vmatpush1.msra.mxu0 0.0
    %247 = vmatprep.subr.mxu0 0.0
    %248 = vmatpush1.msra.mxu0 0.0
    %249 = vmatprep.subr.mxu0 0.0
    %250 = vmatpush1.msra.mxu0 0.0
    %251 = vmatprep.subr.mxu0 0.0
    %252 = vmatpush1.msra.mxu0 0.0
    %253 = vmatprep.subr.mxu0 0.0
    %254 = vmatpush1.msra.mxu0 0.0
    %255 = vmatprep.subr.mxu0 0.0
    %256 = vmatpush1.msra.mxu0 0.0
    %257 = vmatprep.subr.mxu0 0.0
    %258 = vmatpush1.msra.mxu0 0.0
    %259 = vmatprep.subr.mxu0 0.0
    %260 = vmatpush1.msra.mxu0 0.0
    %261 = vmatprep.subr.mxu0 0.0
    %262 = vmatpush1.msra.mxu0 0.0
    %263 = vmatprep.subr.mxu0 0.0
    %264 = vmatpush1.msra.mxu0 0.0
    %265 = vmatprep.subr.mxu0 0.0
    %266 = vmatpush1.msra.mxu0 0.0
    %267 = vmatprep.subr.mxu0 0.0
    %268 = vmatpush1.msra.mxu0 0.0
    %269 = vmatprep.subr.mxu0 0.0
    %270 = vmatpush1.msra.mxu0 0.0
    %271 = vmatprep.subr.mxu0 0.0
    %272 = vmatpush1.msra.mxu0 0.0
    %273 = vmatprep.subr.mxu0 0.0
    %274 = vmatpush1.msra.mxu0 0.0
    %275 = vmatprep.subr.mxu0 0.0
    %276 = vmatpush1.msra.mxu0 0.0
    %277 = vmatprep.subr.mxu0 0.0
    %278 = vmatpush1.msra.mxu0 0.0
    %279 = vmatprep.subr.mxu0 0.0
    %280 = vmatpush1.msra.mxu0 0.0
    %281 = vmatprep.subr.mxu0 0.0
    %282 = vmatpush1.msra.mxu0 0.0
    %283 = vmatprep.subr.mxu0 0.0
    %284 = vmatpush1.msra.mxu0 0.0
    %285 = vmatprep.subr.mxu0 0.0
    %286 = vmatpush1.msra.mxu0 0.0
    %287 = vmatprep.subr.mxu0 0.0
    %288 = vmatpush1.msra.mxu0 0.0
    %289 = vmatprep.subr.mxu0 0.0
    %290 = vmatpush1.msra.mxu0 0.0
    %291 = vmatprep.subr.mxu0 0.0
    %292 = vmatpush1.msra.mxu0 0.0
    %293 = vmatprep.subr.mxu0 0.0
    %294 = vmatpush1.msra.mxu0 0.0
    %295 = vmatprep.subr.mxu0 0.0
    %296 = vmatpush1.msra.mxu0 0.0
    %297 = vmatprep.subr.mxu0 0.0
    %298 = vmatpush1.msra.mxu0 0.0
    %299 = vmatprep.mubr.f32.mxu0 0.0
    %300 = vmatmul.mubr.f32.gmra.mrb[0].mxu0 %v233
    %v301 = vpop.f32.mrb[0].mxu0
    %v302 = vadd.f32 %v229, %v301
    %v303 = vpop.f32.mrb[0].mxu0
    %304 = vdwg.mxu0
    %vm305 = vcmp.ge.f32.partialorder %v302, 0.0
    %v306 = vmul.f32 %v302, 0.01
    %v307 = vsel %vm305, %v302, %v306
    %v308 = vld [vmem:[#allocation11] sm:$0xff]
    %v309 = vld [vmem:[#allocation11 + $0x8] sm:$0xff]
    %v310 = vld [vmem:[#allocation11 + $0x10] sm:$0xff]
    %v311 = vld [vmem:[#allocation11 + $0x18] sm:$0xff]
    %v312 = vld [vmem:[#allocation13] sm:$0x1]
    %v314 = vlaneseq
    %v315 = vshrl.u32 %v314, 7
    %v316 = vsub.s32 0, %v315
    %v317 = vrot.slane %v312, %v316
    %v320 = vsel %vm231, %v307, 0
    %322 = vmatprep.subr.mxu0 0.0
    %323 = vmatpush1.msra.mxu0 %v308
    %324 = vmatprep.subr.mxu0 0.0
    %325 = vmatpush1.msra.mxu0 %v309
    %326 = vmatprep.subr.mxu0 0.0
    %327 = vmatpush1.msra.mxu0 %v310
    %328 = vmatprep.subr.mxu0 0.0
    %329 = vmatpush1.msra.mxu0 %v311
    %330 = vmatprep.subr.mxu0 0.0
    %331 = vmatpush1.msra.mxu0 0.0
    %332 = vmatprep.subr.mxu0 0.0
    %333 = vmatpush1.msra.mxu0 0.0
    %334 = vmatprep.subr.mxu0 0.0
    %335 = vmatpush1.msra.mxu0 0.0
    %336 = vmatprep.subr.mxu0 0.0
    %337 = vmatpush1.msra.mxu0 0.0
    %338 = vmatprep.subr.mxu0 0.0
    %339 = vmatpush1.msra.mxu0 0.0
    %340 = vmatprep.subr.mxu0 0.0
    %341 = vmatpush1.msra.mxu0 0.0
    %342 = vmatprep.subr.mxu0 0.0
    %343 = vmatpush1.msra.mxu0 0.0
    %344 = vmatprep.subr.mxu0 0.0
    %345 = vmatpush1.msra.mxu0 0.0
    %346 = vmatprep.subr.mxu0 0.0
    %347 = vmatpush1.msra.mxu0 0.0
    %348 = vmatprep.subr.mxu0 0.0
    %349 = vmatpush1.msra.mxu0 0.0
    %350 = vmatprep.subr.mxu0 0.0
    %351 = vmatpush1.msra.mxu0 0.0
    %352 = vmatprep.subr.mxu0 0.0
    %353 = vmatpush1.msra.mxu0 0.0
    %354 = vmatprep.subr.mxu0 0.0
    %355 = vmatpush1.msra.mxu0 0.0
    %356 = vmatprep.subr.mxu0 0.0
    %357 = vmatpush1.msra.mxu0 0.0
    %358 = vmatprep.subr.mxu0 0.0
    %359 = vmatpush1.msra.mxu0 0.0
    %360 = vmatprep.subr.mxu0 0.0
    %361 = vmatpush1.msra.mxu0 0.0
    %362 = vmatprep.subr.mxu0 0.0
    %363 = vmatpush1.msra.mxu0 0.0
    %364 = vmatprep.subr.mxu0 0.0
    %365 = vmatpush1.msra.mxu0 0.0
    %366 = vmatprep.subr.mxu0 0.0
    %367 = vmatpush1.msra.mxu0 0.0
    %368 = vmatprep.subr.mxu0 0.0
    %369 = vmatpush1.msra.mxu0 0.0
    %370 = vmatprep.subr.mxu0 0.0
    %371 = vmatpush1.msra.mxu0 0.0
    %372 = vmatprep.subr.mxu0 0.0
    %373 = vmatpush1.msra.mxu0 0.0
    %374 = vmatprep.subr.mxu0 0.0
    %375 = vmatpush1.msra.mxu0 0.0
    %376 = vmatprep.subr.mxu0 0.0
    %377 = vmatpush1.msra.mxu0 0.0
    %378 = vmatprep.subr.mxu0 0.0
    %379 = vmatpush1.msra.mxu0 0.0
    %380 = vmatprep.subr.mxu0 0.0
    %381 = vmatpush1.msra.mxu0 0.0
    %382 = vmatprep.subr.mxu0 0.0
    %383 = vmatpush1.msra.mxu0 0.0
    %384 = vmatprep.subr.mxu0 0.0
    %385 = vmatpush1.msra.mxu0 0.0
    %386 = vmatprep.mubr.f32.mxu0 0.0
    %387 = vmatmul.mubr.f32.gmra.mrb[0].mxu0 %v320
    %v388 = vpop.f32.mrb[0].mxu0
    %v389 = vadd.f32 %v317, %v388
    %v390 = vpop.f32.mrb[0].mxu0
    %391 = vdwg.mxu0
    %vm392 = vcmp.ge.f32.partialorder %v389, 0.0
    %v393 = vmul.f32 %v389, 0.01
    %v394 = vsel %vm392, %v389, %v393
    %vm395 = vcmask 130048
    %396 = vst.msk [vmem:[#allocation14] sm:$0xff] %vm395, %v394
    // Predicated region
    $region58: #{tpu_custom_call.1} parent=1 // pred_check
      _
    $region59: #{tpu_custom_call.1} parent=1 // pred_check_branch
      %398 = sbr.rel (0) target = $region61
    $region60: #{tpu_custom_call.1} parent=1 // pred_region
      %s400 = ssub.s32 128, 128
      %401 = vsyncadd [#allocation4], %s400
      %s403 = sshll.u32 [#allocation14], 4
      %s404 = int_to_ptr.vmem [resolvable:$true] %s403
      %406 = dma.vmem_to_hbm [thread:$0]  %s404, 128, %s7, [#allocation4]
    $region61: #{tpu_custom_call.1} parent=1 // pred_fallthru
      _
    // Predicated region
    $region62: #{tpu_custom_call.1} parent=1 // pred_check
      _
    $region63: #{tpu_custom_call.1} parent=1 // pred_check_branch
      %408 = sbr.rel (0) target = $region65
    $region64: #{tpu_custom_call.1} parent=1 // pred_region
      %409 = dma.done [#allocation4], 128
    $region65: #{tpu_custom_call.1} parent=1 // pred_fallthru
      _
    %410 = vsyncpa [#allocation3], 1
    %411 = vsyncpa [#allocation6], 1
    %412 = vsyncpa [#allocation9], 1
    %413 = vsyncpa [#allocation12], 1
    %414 = vsyncpa [#allocation4], 1

</llo_original>
